<compile_context>
chip_gen: v5e
topology: v5e:2x2
jax: 0.10.0
libtpu: 0.0.40
codegen_flags: <defaults>
</compile_context>

<pallas_src>
import functools
import math

import jax
import jax.numpy as jnp
from jax.experimental import pallas as pl
from jax.experimental.pallas import tpu as pltpu


_LANE_CHOICES = (1024, 512, 256, 128)   # lane-dense widths (multiples of 128)


def _round_up(n, m):
    return ((n + m - 1) // m) * m


def _min_sublanes(*dtypes):
    """dtype-native sublane tile: f32 -> 8, bf16/f16 -> 16, int8/fp8 -> 32."""
    worst = 8
    for dt in dtypes:
        isz = jnp.dtype(dt).itemsize
        worst = max(worst, {4: 8, 2: 16, 1: 32}.get(isz, 8))
    return worst


@functools.lru_cache(maxsize=1)
def _tpu_budget():
    """(target bytes per operand block, vmem_limit_bytes), generation-aware."""
    try:
        vmem = int(pltpu.get_tpu_info().vmem_capacity_bytes)
    except Exception:
        vmem = 64 * 1024 * 1024          # unknown generation -> v7x-safe numbers
    if vmem >= 100 * 1024 * 1024:
        # v5e / v6e: 128 MiB physical VMEM -> 8 MiB/operand (3 arrays x 2 bufs = 48 MiB)
        return 8 * 1024 * 1024, 64 * 1024 * 1024
    # v7x: 64 MiB physical VMEM -> 6 MiB/operand (36 MiB total), keep headroom
    return 6 * 1024 * 1024, 46 * 1024 * 1024


def _pick_tile_rows(rows, cols, max_itemsize, min_rows, target_block_bytes):
    if rows <= min_rows:
        return rows                      # full-dim block: always legal, no masking
    budget_rows = max(min_rows, target_block_bytes // (cols * max_itemsize))
    max_tile_rows = max(min_rows, (budget_rows // min_rows) * min_rows)
    if rows > 2 * min_rows:
        # Keep >= 2 grid steps so ("parallel",) can shard across v7x's 2 TCs.
        cap = _round_up(pl.cdiv(rows, 2), min_rows)
    else:
        cap = _round_up(rows, min_rows)
    return min(max_tile_rows, cap)


def _sub_kernel(x_ref, y_ref, o_ref):
    # Cast folded into the kernel (free VPU work); a (1,1) operand broadcasts.
    dt = o_ref.dtype
    o_ref[...] = x_ref[...].astype(dt) - y_ref[...].astype(dt)


def _sub_2d(lhs2d, rhs2d, out_dtype, target_block, vmem_limit):
    """Elementwise lhs - rhs on 2-D operands.

    Either operand may be (1,1): it gets a VMEM-resident (1,1) block and is
    broadcast inside the kernel (no materialized broadcast in HBM).
    """
    big2d = lhs2d if lhs2d.size > 1 else rhs2d
    rows, cols = big2d.shape

    tiled_dtypes = [out_dtype] + [a.dtype for a in (lhs2d, rhs2d) if a.size > 1]
    min_rows = _min_sublanes(*tiled_dtypes)
    max_item = max(jnp.dtype(d).itemsize for d in tiled_dtypes)
    tile_rows = _pick_tile_rows(rows, cols, max_item, min_rows, target_block)

    def spec_for(a):
        if a.size == 1:
            return pl.BlockSpec((1, 1), lambda i: (0, 0))      # stays resident
        return pl.BlockSpec((tile_rows, cols), lambda i: (i, 0))

    streamed_bytes = sum(jnp.dtype(d).itemsize for d in tiled_dtypes)
    return pl.pallas_call(
        _sub_kernel,
        out_shape=jax.ShapeDtypeStruct((rows, cols), out_dtype),
        grid_spec=pltpu.PrefetchScalarGridSpec(
            num_scalar_prefetch=0,
            grid=(pl.cdiv(rows, tile_rows),),     # ragged last block is masked
            in_specs=[spec_for(lhs2d), spec_for(rhs2d)],
            out_specs=pl.BlockSpec((tile_rows, cols), lambda i: (i, 0)),
        ),
        compiler_params=pltpu.CompilerParams(
            dimension_semantics=("parallel",),
            vmem_limit_bytes=vmem_limit,
        ),
        cost_estimate=pl.CostEstimate(
            flops=rows * cols,
            transcendentals=0,
            bytes_accessed=rows * cols * streamed_bytes,
        ),
    )(lhs2d, rhs2d)


def torch_sub(x, y):
    """Equivalent of torch.sub(x, y): elementwise x - y with broadcasting.

    (torch.sub's optional `alpha` argument is out of scope for this module.)
    """
    x = jnp.asarray(x)
    y = jnp.asarray(y)
    out_shape = jnp.broadcast_shapes(x.shape, y.shape)
    # TODO(synk): jnp.promote_types (NumPy rules) can differ from
    # torch.result_type for some mixed-integer cases; float paths match.
    out_dtype = jnp.promote_types(x.dtype, y.dtype)
    total = math.prod(out_shape) if out_shape else 1

    if total == 0:
        return jnp.zeros(out_shape, out_dtype)

    x_scalar = x.size == 1
    y_scalar = y.size == 1

    # Tiny problems: a kernel launch is not worth ~0.35 us of step overhead and
    # sub-(8,128) tiles would be fully masked anyway.
    if total < 128:
        return (x.astype(out_dtype) - y.astype(out_dtype)).reshape(out_shape)

    # General (non-scalar) broadcasting falls back to materialization.
    # TODO(synk): fold leading-dim broadcasts into the BlockSpec index_map
    # (block-0-resident tiles) instead of materializing them in HBM.
    if not x_scalar and x.shape != out_shape:
        x = jnp.broadcast_to(x, out_shape)
    if not y_scalar and y.shape != out_shape:
        y = jnp.broadcast_to(y, out_shape)

    target_block, vmem_limit = _tpu_budget()

    # ---- layout selection (zero-copy whenever possible) --------------------
    last = out_shape[-1]
    min_rows_guess = _min_sublanes(x.dtype, y.dtype, out_dtype)
    max_item = max(jnp.dtype(d).itemsize for d in (x.dtype, y.dtype, out_dtype))

    if last % 128 == 0 and min_rows_guess * last * max_item <= target_block:
        # Trailing dim already lane-aligned: tile the natural 2-D view.
        cols = last
        main = total
    elif total % 128 == 0:
        # Flatten to the widest lane count dividing the element count.
        cols = next(c for c in _LANE_CHOICES if total % c == 0)
        main = total
    else:
        # Ragged size: kernel on the 128-aligned prefix, <128-element tail in jnp.
        main = (total // 128) * 128
        cols = next(c for c in _LANE_CHOICES if main % c == 0)
    rows = main // cols

    def to_2d(a):
        flat = a.reshape(-1)              # collapsing contiguous dims is free
        if main != total:
            flat = flat[:main]
        return flat.reshape(rows, cols)

    if x_scalar:
        lhs2d, rhs2d = x.reshape(1, 1), to_2d(y)
    elif y_scalar:
        lhs2d, rhs2d = to_2d(x), y.reshape(1, 1)
    else:
        lhs2d, rhs2d = to_2d(x), to_2d(y)

    out2d = _sub_2d(lhs2d, rhs2d, out_dtype, target_block, vmem_limit)

    if main == total:
        return out2d.reshape(out_shape)

    # Stitch the tiny (<128 element) tail back on.
    xt = x.reshape(-1) if x_scalar else x.reshape(-1)[main:]
    yt = y.reshape(-1) if y_scalar else y.reshape(-1)[main:]
    tail = xt.astype(out_dtype) - yt.astype(out_dtype)
    return jnp.concatenate([out2d.reshape(-1), tail]).reshape(out_shape)


if __name__ == "__main__":
    key = jax.random.PRNGKey(0)
    k1, k2, k3, k4, k5, k6, k7 = jax.random.split(key, 7)

    # 1) Main case: NCHW same-shape subtract (the TorchSub forward).
    x = jax.random.normal(k1, (2, 4, 16, 16), dtype=jnp.float32)
    y = jax.random.normal(k2, (2, 4, 16, 16), dtype=jnp.float32)
    out = torch_sub(x, y)
    jax.block_until_ready(out)
    ref = x - y
    assert out.shape == ref.shape and out.dtype == ref.dtype
    assert jnp.allclose(out, ref, atol=1e-6)

    # 2) Scalar RHS broadcast: scalar stays VMEM-resident, no broadcast_to pass.
    s = jnp.float32(0.5)
    out2 = torch_sub(x, s)
    assert jnp.allclose(out2, x - s, atol=1e-6)

    # 3) Lane-aligned trailing dim + ragged last block + >=2 grid steps.
    a = jax.random.normal(k3, (3, 10, 256), dtype=jnp.float32)
    b = jax.random.normal(k4, (3, 10, 256), dtype=jnp.float32)
    out3 = torch_sub(a, b)
    assert jnp.allclose(out3, a - b, atol=1e-6)

    # 4) Mixed dtypes: bf16 -> f32 promotion folded into the kernel body.
    c = jax.random.normal(k5, (2, 4, 16, 16), dtype=jnp.bfloat16)
    out4 = torch_sub(x, c)
    ref4 = x - c
    assert out4.dtype == ref4.dtype
    assert jnp.allclose(out4, ref4, atol=1e-6)

    # 5) Non-128-divisible element count: kernel on the aligned prefix, jnp tail.
    d = jax.random.normal(k6, (5, 7, 9), dtype=jnp.float32)
    e = jax.random.normal(k7, (5, 7, 9), dtype=jnp.float32)
    out5 = torch_sub(d, e)
    assert jnp.allclose(out5, d - e, atol=1e-6)

    jax.block_until_ready((out, out2, out3, out4, out5))
    print("KERNEL_OK")
</pallas_src>

<mosaic_0001>
module attributes {stable_mosaic.version = 11 : i64} {
  func.func @_sub_kernel(%arg0: i32, %arg1: memref<2x1024xf32, #tpu.memory_space<vmem>>, %arg2: memref<2x1024xf32, #tpu.memory_space<vmem>>, %arg3: memref<2x1024xf32, #tpu.memory_space<vmem>>) attributes {dimension_semantics = [#tpu.dimension_semantics<parallel>], iteration_bounds = array<i64: 1>, scalar_prefetch = 0 : i64, scratch_operands = 0 : i64, tpu.core_type = #tpu.core_type<tc>, window_params = [{transform_indices = @transform_0, window_bounds = array<i64: 2, 1024>}, {transform_indices = @transform_1, window_bounds = array<i64: 2, 1024>}, {transform_indices = @transform_2, window_bounds = array<i64: 2, 1024>}]} {
    %c0 = arith.constant 0 : index
    %c0_0 = arith.constant 0 : index
    %0 = vector.load %arg1[%c0, %c0_0] : memref<2x1024xf32, #tpu.memory_space<vmem>>, vector<2x1024xf32>
    %c0_1 = arith.constant 0 : index
    %c0_2 = arith.constant 0 : index
    %1 = vector.load %arg2[%c0_1, %c0_2] : memref<2x1024xf32, #tpu.memory_space<vmem>>, vector<2x1024xf32>
    %2 = arith.subf %0, %1 : vector<2x1024xf32>
    %c0_3 = arith.constant 0 : index
    %c0_4 = arith.constant 0 : index
    %3 = vector.load %arg3[%c0_3, %c0_4] : memref<2x1024xf32, #tpu.memory_space<vmem>>, vector<2x1024xf32>
    tpu.vector_store %arg3[%c0_3, %c0_4], %2 {strides = array<i32>} : memref<2x1024xf32, #tpu.memory_space<vmem>>, vector<2x1024xf32>,
    return
  }
  func.func @transform_0(%arg0: i32) -> (i32, i32) {
    %c0_i32 = arith.constant 0 : i32
    %c0_i32_0 = arith.constant 0 : i32
    return %arg0, %c0_i32 : i32, i32
  }
  func.func @transform_1(%arg0: i32) -> (i32, i32) {
    %c0_i32 = arith.constant 0 : i32
    %c0_i32_0 = arith.constant 0 : i32
    return %arg0, %c0_i32 : i32, i32
  }
  func.func @transform_2(%arg0: i32) -> (i32, i32) {
    %c0_i32 = arith.constant 0 : i32
    %c0_i32_0 = arith.constant 0 : i32
    return %arg0, %c0_i32 : i32, i32
  }
}

</mosaic_0001>

<llo_original>
// kernel: tpu_custom_call.1
$region0: #{tpu_custom_call.1}
  #allocation0 [shape = 'u32[]', space=smem, size = 0x4, offset = 0x4, fixed_abs, tag = 'smem constant byte address 0x4 - core index']
  #allocation1 [shape = 'u32[72,128]{1,0:T(1,128)}', space=vmem, size = 0x9000, scoped, tag = 'internal scratch']
  %s0 = inlined_call_operand.hbm [shape: f32[2,1024], index: 0, kind: input, shape index: {}]
  %s1 = inlined_call_operand.hbm [shape: f32[2,1024], index: 1, kind: input, shape index: {}]
  %s2 = inlined_call_operand.hbm [shape: f32[2,1024], index: 2, kind: output, shape index: {}]
  %s3 = sld [smem:[#allocation0]]
  $region26: #{tpu_custom_call.1} parent=0
    _
  %s5 = ssub.s32 1, %s3
  %s6 = scalar_select 0, %s5, %s3
  $region1: #{tpu_custom_call.1} parent=0
    #allocation2 [shape = 'u8[8192]{0}', space=vmem, size = 0x2000, scoped, tag = 'input window, operand 0, single buffered']
    #allocation3 [shape = 's32[1]{0}', space=sflag, size = 0x4, scoped, tag = 'scoped memory for tpu_custom_call.1']
    #allocation4 [shape = 's32[1]{0}', space=sflag, size = 0x4, scoped, tag = 'scoped memory for tpu_custom_call.1']
    #allocation5 [shape = 'u8[8192]{0}', space=vmem, size = 0x2000, scoped, tag = 'input window, operand 1, single buffered']
    #allocation6 [shape = 's32[1]{0}', space=sflag, size = 0x4, scoped, tag = 'scoped memory for tpu_custom_call.1']
    #allocation7 [shape = 'u8[8192]{0}', space=vmem, size = 0x2000, scoped, tag = 'output window, operand 0, single buffered']
    %7 = vsyncpa [#allocation3], 0
    %8 = vsyncpa [#allocation6], 0
    %9 = vsyncpa [#allocation4], 0
    // Predicated region
    $region2: #{tpu_custom_call.1} parent=1 // pred_check
      _
    $region3: #{tpu_custom_call.1} parent=1 // pred_check_branch
      %11 = sbr.rel (0) target = $region5
    $region4: #{tpu_custom_call.1} parent=1 // pred_region
      %13 = vsyncadd [#allocation3], 0
      %s15 = sshll.u32 %s0, 4
      %s16 = int_to_ptr.hbm [resolvable:$true] %s15
      %s17 = sshll.u32 [#allocation2], 4
      %s18 = int_to_ptr.vmem [resolvable:$true] %s17
      %20 = dma.hbm_to_vmem [thread:$0]  %s16, 256, %s18, [#allocation3]
    $region5: #{tpu_custom_call.1} parent=1 // pred_fallthru
      _
    // Predicated region
    $region6: #{tpu_custom_call.1} parent=1 // pred_check
      _
    $region7: #{tpu_custom_call.1} parent=1 // pred_check_branch
      %22 = sbr.rel (0) target = $region9
    $region8: #{tpu_custom_call.1} parent=1 // pred_region
      %24 = vsyncadd [#allocation6], 0
      %s26 = sshll.u32 %s1, 4
      %s27 = int_to_ptr.hbm [resolvable:$true] %s26
      %s28 = sshll.u32 [#allocation5], 4
      %s29 = int_to_ptr.vmem [resolvable:$true] %s28
      %31 = dma.hbm_to_vmem [thread:$0]  %s27, 256, %s29, [#allocation6]
    $region9: #{tpu_custom_call.1} parent=1 // pred_fallthru
      _
    // Predicated region
    $region10: #{tpu_custom_call.1} parent=1 // pred_check
      _
    $region11: #{tpu_custom_call.1} parent=1 // pred_check_branch
      %33 = sbr.rel (0) target = $region13
    $region12: #{tpu_custom_call.1} parent=1 // pred_region
      %35 = dma.done [#allocation3], 256
    $region13: #{tpu_custom_call.1} parent=1 // pred_fallthru
      _
    // Predicated region
    $region14: #{tpu_custom_call.1} parent=1 // pred_check
      _
    $region15: #{tpu_custom_call.1} parent=1 // pred_check_branch
      %37 = sbr.rel (0) target = $region17
    $region16: #{tpu_custom_call.1} parent=1 // pred_region
      %39 = dma.done [#allocation6], 256
    $region17: #{tpu_custom_call.1} parent=1 // pred_fallthru
      _
    %v40 = vld [vmem:[#allocation2] sm:$0xff]
    %v41 = vld [vmem:[#allocation2 + $0x8] sm:$0xff]
    %v42 = vld [vmem:[#allocation5] sm:$0xff]
    %v43 = vld [vmem:[#allocation5 + $0x8] sm:$0xff]
    %v44 = vsub.f32 %v40, %v42
    %v45 = vsub.f32 %v41, %v43
    %46 = vst [vmem:[#allocation7] sm:$0xff] %v44
    %47 = vst [vmem:[#allocation7 + $0x8] sm:$0xff] %v45
    // Predicated region
    $region18: #{tpu_custom_call.1} parent=1 // pred_check
      _
    $region19: #{tpu_custom_call.1} parent=1 // pred_check_branch
      %49 = sbr.rel (0) target = $region21
    $region20: #{tpu_custom_call.1} parent=1 // pred_region
      %51 = vsyncadd [#allocation4], 0
      %s53 = sshll.u32 [#allocation7], 4
      %s54 = int_to_ptr.vmem [resolvable:$true] %s53
      %s55 = sshll.u32 %s2, 4
      %s56 = int_to_ptr.hbm [resolvable:$true] %s55
      %58 = dma.vmem_to_hbm [thread:$0]  %s54, 256, %s56, [#allocation4]
    $region21: #{tpu_custom_call.1} parent=1 // pred_fallthru
      _
    // Predicated region
    $region22: #{tpu_custom_call.1} parent=1 // pred_check
      _
    $region23: #{tpu_custom_call.1} parent=1 // pred_check_branch
      %60 = sbr.rel (0) target = $region25
    $region24: #{tpu_custom_call.1} parent=1 // pred_region
      %62 = dma.done [#allocation4], 256
    $region25: #{tpu_custom_call.1} parent=1 // pred_fallthru
      _
    %63 = vsyncpa [#allocation3], 1
    %64 = vsyncpa [#allocation6], 1
    %65 = vsyncpa [#allocation4], 1

</llo_original>
